<compile_context>
chip_gen: v6e
topology: v6e:2x2x1
jax: 0.10.0
libtpu: 0.0.40
codegen_flags: <defaults>
</compile_context>

<pallas_src>
import math

import jax
import jax.numpy as jnp
from jax.experimental import pallas as pl
from jax.experimental.pallas import tpu as pltpu

# Folded constants: 0.5*x*(1+tanh(z)) == x*sigmoid(2z),
# with 2z = x*(A + B*x*x), A = 2*sqrt(2/pi), B = A*0.044715.
_A = 2.0 * math.sqrt(2.0 / math.pi)
_B = _A * 0.044715


def gelu_kernel(x_ref, o_ref):
    x = x_ref[...].astype(jnp.float32)
    z2 = x * (jnp.float32(_A) + jnp.float32(_B) * (x * x))
    o_ref[...] = (x * jax.nn.sigmoid(z2)).astype(o_ref.dtype)


def gelu(x, *, tile_rows=512):
    orig_shape = x.shape
    hidden = orig_shape[-1]
    rows = math.prod(orig_shape[:-1]) if len(orig_shape) > 1 else 1
    x2d = x.reshape(rows, hidden)

    # Tile rows for big inputs (pipelined, HBM-bound regime); for small inputs use
    # the full slab as a single block (block == full array dims is always legal).
    tr = tile_rows if rows > tile_rows else rows
    grid = (pl.cdiv(rows, tr),)

    out2d = pl.pallas_call(
        gelu_kernel,
        out_shape=jax.ShapeDtypeStruct((rows, hidden), x.dtype),
        grid_spec=pl.GridSpec(
            grid=grid,
            in_specs=[pl.BlockSpec((tr, hidden), lambda i: (i, 0))],
            out_specs=pl.BlockSpec((tr, hidden), lambda i: (i, 0)),
        ),
        compiler_params=pltpu.CompilerParams(
            dimension_semantics=("parallel",),
        ),
    )(x2d)

    return out2d.reshape(orig_shape)


if __name__ == "__main__":
    key = jax.random.PRNGKey(0)
    # matches the module's example input: torch.rand(2, 3, 768) -> uniform [0, 1)
    x = jax.random.uniform(key, (2, 3, 768), dtype=jnp.float32)

    out = gelu(x)
    out = jax.block_until_ready(out)

    # reference check in plain JAX (same tanh-approximation formula as the module)
    ref = 0.5 * x * (1.0 + jnp.tanh(jnp.sqrt(2.0 / jnp.pi) * (x + 0.044715 * x**3)))
    assert out.shape == x.shape and out.dtype == x.dtype
    assert jnp.allclose(out, ref, atol=1e-5, rtol=1e-5)

    print("KERNEL_OK")
</pallas_src>

<mosaic_0001>
module attributes {stable_mosaic.version = 11 : i64} {
  func.func @gelu_kernel(%arg0: i32, %arg1: memref<6x768xf32, #tpu.memory_space<vmem>>, %arg2: memref<6x768xf32, #tpu.memory_space<vmem>>) attributes {dimension_semantics = [#tpu.dimension_semantics<parallel>], iteration_bounds = array<i64: 1>, scalar_prefetch = 0 : i64, scratch_operands = 0 : i64, tpu.core_type = #tpu.core_type<tc>, window_params = [{transform_indices = @transform_0, window_bounds = array<i64: 6, 768>}, {transform_indices = @transform_1, window_bounds = array<i64: 6, 768>}]} {
    %c0 = arith.constant 0 : index
    %c0_0 = arith.constant 0 : index
    %0 = vector.load %arg1[%c0, %c0_0] : memref<6x768xf32, #tpu.memory_space<vmem>>, vector<6x768xf32>
    %1 = arith.mulf %0, %0 : vector<6x768xf32>
    %cst = arith.constant 0.0713548139 : f32
    %2 = vector.broadcast %cst : f32 to vector<6x768xf32>
    %3 = arith.mulf %2, %1 : vector<6x768xf32>
    %cst_1 = arith.constant 1.59576917 : f32
    %4 = vector.broadcast %cst_1 : f32 to vector<6x768xf32>
    %5 = arith.addf %4, %3 : vector<6x768xf32>
    %6 = arith.mulf %0, %5 : vector<6x768xf32>
    %7 = arith.negf %6 : vector<6x768xf32>
    %8 = math.exp %7 : vector<6x768xf32>
    %cst_2 = arith.constant 1.000000e+00 : f32
    %9 = vector.broadcast %cst_2 : f32 to vector<6x768xf32>
    %10 = arith.addf %9, %8 : vector<6x768xf32>
    %11 = arith.divf %9, %10 : vector<6x768xf32>
    %12 = arith.mulf %0, %11 : vector<6x768xf32>
    %c0_3 = arith.constant 0 : index
    %c0_4 = arith.constant 0 : index
    %13 = vector.load %arg2[%c0_3, %c0_4] : memref<6x768xf32, #tpu.memory_space<vmem>>, vector<6x768xf32>
    tpu.vector_store %arg2[%c0_3, %c0_4], %12 {strides = array<i32>} : memref<6x768xf32, #tpu.memory_space<vmem>>, vector<6x768xf32>,
    return
  }
  func.func @transform_0(%arg0: i32) -> (i32, i32) {
    %c0_i32 = arith.constant 0 : i32
    %c0_i32_0 = arith.constant 0 : i32
    return %arg0, %c0_i32 : i32, i32
  }
  func.func @transform_1(%arg0: i32) -> (i32, i32) {
    %c0_i32 = arith.constant 0 : i32
    %c0_i32_0 = arith.constant 0 : i32
    return %arg0, %c0_i32 : i32, i32
  }
}

</mosaic_0001>

<llo_original>
// kernel: tpu_custom_call.1
$region0: #{tpu_custom_call.1}
  #allocation0 [shape = 'u32[]', space=smem, size = 0x4, offset = 0x4, fixed_abs, tag = 'smem constant byte address 0x4 - core index']
  #allocation1 [shape = 'u32[144,128]{1,0:T(1,128)}', space=vmem, size = 0x12000, scoped, tag = 'internal scratch']
  %s0 = inlined_call_operand.hbm [shape: f32[6,768], index: 0, kind: input, shape index: {}]
  %s1 = inlined_call_operand.hbm [shape: f32[6,768], index: 1, kind: output, shape index: {}]
  %s2 = sld [smem:[#allocation0]]
  $region18: #{tpu_custom_call.1} parent=0
    _
  %s4 = ssub.s32 1, %s2
  %s5 = scalar_select 0, %s4, %s2
  $region1: #{tpu_custom_call.1} parent=0
    #allocation2 [shape = 'u8[24576]{0}', space=vmem, size = 0x6000, scoped, tag = 'input window, operand 0, single buffered']
    #allocation3 [shape = 's32[1]{0}', space=sflag, size = 0x4, scoped, tag = 'scoped memory for tpu_custom_call.1']
    #allocation4 [shape = 's32[1]{0}', space=sflag, size = 0x4, scoped, tag = 'scoped memory for tpu_custom_call.1']
    #allocation5 [shape = 'u8[24576]{0}', space=vmem, size = 0x6000, scoped, tag = 'output window, operand 0, single buffered']
    %6 = vsyncpa [#allocation3], 0
    %7 = vsyncpa [#allocation4], 0
    // Predicated region
    $region2: #{tpu_custom_call.1} parent=1 // pred_check
      _
    $region3: #{tpu_custom_call.1} parent=1 // pred_check_branch
      %9 = sbr.rel (0) target = $region5
    $region4: #{tpu_custom_call.1} parent=1 // pred_region
      %s11 = ssub.s32 768, 768
      %12 = vsyncadd [#allocation3], %s11
      %s14 = sshll.u32 [#allocation2], 4
      %s15 = int_to_ptr.vmem [resolvable:$true] %s14
      %17 = dma.hbm_to_vmem [thread:$0]  %s0, 768, %s15, [#allocation3]
    $region5: #{tpu_custom_call.1} parent=1 // pred_fallthru
      _
    // Predicated region
    $region6: #{tpu_custom_call.1} parent=1 // pred_check
      _
    $region7: #{tpu_custom_call.1} parent=1 // pred_check_branch
      %19 = sbr.rel (0) target = $region9
    $region8: #{tpu_custom_call.1} parent=1 // pred_region
      %20 = dma.done [#allocation3], 768
    $region9: #{tpu_custom_call.1} parent=1 // pred_fallthru
      _
    %v21 = vld [vmem:[#allocation2] sm:$0x3f]
    %v22 = vld [vmem:[#allocation2 + $0x8] sm:$0x3f]
    %v23 = vld [vmem:[#allocation2 + $0x10] sm:$0x3f]
    %v24 = vld [vmem:[#allocation2 + $0x18] sm:$0x3f]
    %v25 = vld [vmem:[#allocation2 + $0x20] sm:$0x3f]
    %v26 = vld [vmem:[#allocation2 + $0x28] sm:$0x3f]
    %v27 = vmul.f32 %v21, %v21
    %v28 = vmul.f32 %v22, %v22
    %v29 = vmul.f32 %v23, %v23
    %v30 = vmul.f32 %v24, %v24
    %v31 = vmul.f32 %v25, %v25
    %v32 = vmul.f32 %v26, %v26
    %v33 = vmul.f32 %v27, 0.071354814
    %v34 = vmul.f32 %v28, 0.071354814
    %v35 = vmul.f32 %v29, 0.071354814
    %v36 = vmul.f32 %v30, 0.071354814
    %v37 = vmul.f32 %v31, 0.071354814
    %v38 = vmul.f32 %v32, 0.071354814
    %v39 = vadd.f32 %v33, 1.5957692
    %v40 = vadd.f32 %v34, 1.5957692
    %v41 = vadd.f32 %v35, 1.5957692
    %v42 = vadd.f32 %v36, 1.5957692
    %v43 = vadd.f32 %v37, 1.5957692
    %v44 = vadd.f32 %v38, 1.5957692
    %v45 = vmul.f32 %v21, %v39
    %v46 = vmul.f32 %v22, %v40
    %v47 = vmul.f32 %v23, %v41
    %v48 = vmul.f32 %v24, %v42
    %v49 = vmul.f32 %v25, %v43
    %v50 = vmul.f32 %v26, %v44
    %v51 = vxor.u32 %v45, 2147483648
    %v52 = vxor.u32 %v46, 2147483648
    %v53 = vxor.u32 %v47, 2147483648
    %v54 = vxor.u32 %v48, 2147483648
    %v55 = vxor.u32 %v49, 2147483648
    %v56 = vxor.u32 %v50, 2147483648
    %v57 = vmul.f32 %v51, 1.442695
    %v58 = vpow.pop %v57
    %v59 = vmul.f32 %v52, 1.442695
    %v60 = vpow.pop %v59
    %v61 = vmul.f32 %v53, 1.442695
    %v62 = vpow.pop %v61
    %v63 = vmul.f32 %v54, 1.442695
    %v64 = vpow.pop %v63
    %v65 = vmul.f32 %v55, 1.442695
    %v66 = vpow.pop %v65
    %v67 = vmul.f32 %v56, 1.442695
    %v68 = vpow.pop %v67
    %v69 = vadd.f32 %v58, 1.0
    %v70 = vadd.f32 %v60, 1.0
    %v71 = vadd.f32 %v62, 1.0
    %v72 = vadd.f32 %v64, 1.0
    %v73 = vadd.f32 %v66, 1.0
    %v74 = vadd.f32 %v68, 1.0
    %v75 = vrcp.pop %v69
    %v76 = vmul.f32 1.0, %v75
    %v77 = vrcp.pop %v70
    %v78 = vmul.f32 1.0, %v77
    %v79 = vrcp.pop %v71
    %v80 = vmul.f32 1.0, %v79
    %v81 = vrcp.pop %v72
    %v82 = vmul.f32 1.0, %v81
    %v83 = vrcp.pop %v73
    %v84 = vmul.f32 1.0, %v83
    %v85 = vrcp.pop %v74
    %v86 = vmul.f32 1.0, %v85
    %v87 = vmul.f32 %v21, %v76
    %v88 = vmul.f32 %v22, %v78
    %v89 = vmul.f32 %v23, %v80
    %v90 = vmul.f32 %v24, %v82
    %v91 = vmul.f32 %v25, %v84
    %v92 = vmul.f32 %v26, %v86
    %93 = vst [vmem:[#allocation5] sm:$0x3f] %v87
    %94 = vst [vmem:[#allocation5 + $0x8] sm:$0x3f] %v88
    %95 = vst [vmem:[#allocation5 + $0x10] sm:$0x3f] %v89
    %96 = vst [vmem:[#allocation5 + $0x18] sm:$0x3f] %v90
    %97 = vst [vmem:[#allocation5 + $0x20] sm:$0x3f] %v91
    %98 = vst [vmem:[#allocation5 + $0x28] sm:$0x3f] %v92
    // Predicated region
    $region10: #{tpu_custom_call.1} parent=1 // pred_check
      _
    $region11: #{tpu_custom_call.1} parent=1 // pred_check_branch
      %100 = sbr.rel (0) target = $region13
    $region12: #{tpu_custom_call.1} parent=1 // pred_region
      %s102 = ssub.s32 768, 768
      %103 = vsyncadd [#allocation4], %s102
      %s105 = sshll.u32 [#allocation5], 4
      %s106 = int_to_ptr.vmem [resolvable:$true] %s105
      %108 = dma.vmem_to_hbm [thread:$0]  %s106, 768, %s1, [#allocation4]
    $region13: #{tpu_custom_call.1} parent=1 // pred_fallthru
      _
    // Predicated region
    $region14: #{tpu_custom_call.1} parent=1 // pred_check
      _
    $region15: #{tpu_custom_call.1} parent=1 // pred_check_branch
      %110 = sbr.rel (0) target = $region17
    $region16: #{tpu_custom_call.1} parent=1 // pred_region
      %111 = dma.done [#allocation4], 768
    $region17: #{tpu_custom_call.1} parent=1 // pred_fallthru
      _
    %112 = vsyncpa [#allocation3], 1
    %113 = vsyncpa [#allocation4], 1

</llo_original>
